<compile_context>
chip_gen: v7x
topology: tpu7x:2x2x1
jax: 0.10.0
libtpu: 0.0.40
codegen_flags: <defaults>
</compile_context>

<pallas_src>
import functools
import math

import jax
import jax.numpy as jnp
from jax.experimental import pallas as pl
from jax.experimental.pallas import tpu as pltpu


# 64 MiB scoped-VMEM ceiling: comfortably above the default 16/32 MiB on
# v5e/v6e (128 MiB physical) while not exceeding v7x's 64 MiB/TC physical.
_VMEM_LIMIT_BYTES = 64 * 1024 * 1024


def _pick_tile(dim, want):
    """Full-extent block when dim <= want (always legal); otherwise `want`
    (already a multiple of the (8,128) alignment); ragged last blocks are
    masked by Pallas."""
    return dim if dim <= want else want


# --------------------------------------------------------------------------
# Linear kernel:  [LayerNorm ->] x @ W + b  [-> ReLU] [-> + residual]
# --------------------------------------------------------------------------
def _make_linear_kernel(activation, has_ln, has_residual, eps):
    def kernel(*refs):
        idx = 0
        x_ref = refs[idx]; idx += 1
        if has_ln:
            g_ref = refs[idx]; bln_ref = refs[idx + 1]; idx += 2
        w_ref = refs[idx]; b_ref = refs[idx + 1]; idx += 2
        r_ref = None
        if has_residual:
            r_ref = refs[idx]; idx += 1
        o_ref = refs[idx]

        x = x_ref[...].astype(jnp.float32)                       # (tm, K)
        if has_ln:
            # torch LayerNorm in the reference module: unbiased std (N-1),
            # eps added to std.  Recomputed per N-tile; VPU/XLU work hides
            # under the MXU slot.
            k_dim = x.shape[-1]
            mean = jnp.mean(x, axis=-1, keepdims=True)
            diff = x - mean
            var = jnp.sum(diff * diff, axis=-1, keepdims=True) * (1.0 / (k_dim - 1))
            std = jnp.sqrt(var)
            x = (g_ref[...].astype(jnp.float32) * diff / (std + eps)
                 + bln_ref[...].astype(jnp.float32))

        acc = jnp.dot(x, w_ref[...].astype(jnp.float32),
                      preferred_element_type=jnp.float32)
        acc = acc + b_ref[...].astype(jnp.float32)
        if activation == "relu":
            acc = jnp.maximum(acc, 0.0)
        if r_ref is not None:
            acc = acc + r_ref[...].astype(jnp.float32)
        o_ref[...] = acc.astype(o_ref.dtype)

    return kernel


def linear_forward(x, w, b, *, ln=None, residual=None, activation=None,
                   tm=512, tn=512):
    """y = [optional LN](x) @ w + b, optional ReLU, optional + residual.

    ln: None or (gamma, beta, eps) applied to x rows before the matmul.
    """
    m, k = x.shape
    kw, n = w.shape
    assert k == kw
    tm_eff = _pick_tile(m, tm)      # multiple of 8 (or full extent)
    tn_eff = _pick_tile(n, tn)      # multiple of 128 (or full extent)
    gm, gn = pl.cdiv(m, tm_eff), pl.cdiv(n, tn_eff)

    # Pick which operand stays resident across the fast grid axis so the
    # RE-STREAMED operand is the smaller of X (MxK) vs W (KxN).
    weight_stationary = (gm - 1) * k * n > (gn - 1) * m * k
    if weight_stationary:
        grid = (gn, gm)                               # inner axis = row tiles
        x_map = lambda j, i: (i, 0)
        w_map = lambda j, i: (0, j)
        col_map = lambda j, i: (0, j)
        out_map = lambda j, i: (i, j)
    else:
        grid = (gm, gn)                               # inner axis = col tiles
        x_map = lambda i, j: (i, 0)
        w_map = lambda i, j: (0, j)
        col_map = lambda i, j: (0, j)
        out_map = lambda i, j: (i, j)
    const_map = lambda a, bb: (0, 0)

    operands = [x]
    in_specs = [pl.BlockSpec((tm_eff, k), x_map)]     # activation row tile
    eps = None
    if ln is not None:
        gamma, beta, eps = ln
        operands += [gamma.reshape(1, k), beta.reshape(1, k)]
        in_specs += [pl.BlockSpec((1, k), const_map),
                     pl.BlockSpec((1, k), const_map)]
    operands += [w, b.reshape(1, n)]
    in_specs += [pl.BlockSpec((k, tn_eff), w_map),    # weight column block
                 pl.BlockSpec((1, tn_eff), col_map)]  # bias (resident per j)
    if residual is not None:
        operands.append(residual)
        in_specs.append(pl.BlockSpec((tm_eff, tn_eff), out_map))

    itemsize = jnp.dtype(x.dtype).itemsize
    if weight_stationary:
        streamed = gn * m * k + k * n
    else:
        streamed = m * k + gm * k * n
    out_streams = 2 if residual is not None else 1
    cost = pl.CostEstimate(
        flops=2 * m * k * n,
        transcendentals=0,
        bytes_accessed=(streamed + n + out_streams * m * n) * itemsize,
    )

    return pl.pallas_call(
        _make_linear_kernel(activation, ln is not None, residual is not None, eps),
        out_shape=jax.ShapeDtypeStruct((m, n), x.dtype),
        grid_spec=pltpu.PrefetchScalarGridSpec(
            num_scalar_prefetch=0,
            grid=grid,
            in_specs=in_specs,
            out_specs=pl.BlockSpec((tm_eff, tn_eff), out_map),
        ),
        compiler_params=pltpu.CompilerParams(
            dimension_semantics=("parallel", "parallel"),
            vmem_limit_bytes=_VMEM_LIMIT_BYTES,
        ),
        cost_estimate=cost,
    )(*operands)


# --------------------------------------------------------------------------
# Multi-head attention: one grid step per batch, all heads, straight from
# the fused QKV buffer; lane-dense (S, D) output (no splits / transposes).
# --------------------------------------------------------------------------
def _attention_kernel(mask_ref, qkv_ref, o_ref, *, num_heads, head_dim):
    m = mask_ref[...]                                   # (1, S); 0 = masked key
    d = num_heads * head_dim
    outs = []
    # Static unroll over heads (compile-time constant, amortizes grid overhead
    # vs. per-(b,h) steps and keeps the writeback one lane-dense store).
    for h in range(num_heads):
        lo = h * head_dim
        q = qkv_ref[:, lo:lo + head_dim].astype(jnp.float32)          # (S, dk)
        k = qkv_ref[:, d + lo:d + lo + head_dim].astype(jnp.float32)  # (S, dk)
        v = qkv_ref[:, 2 * d + lo:2 * d + lo + head_dim].astype(jnp.float32)
        # q already carries 1/sqrt(dk) (folded into w_qkv); q @ k.T without
        # materializing a transpose.
        s = jax.lax.dot_general(q, k, (((1,), (1,)), ((), ())),
                                preferred_element_type=jnp.float32)    # (S, S)
        s = jnp.where(m == 0, -1e9, s)
        s = s - jnp.max(s, axis=-1, keepdims=True)
        p = jnp.exp(s)
        # TODO(synk): pl.reciprocal(..., approx=True) in production (EUP slot);
        # exact form kept here for a tight small-shape reference check.
        p = p * pl.reciprocal(jnp.sum(p, axis=-1, keepdims=True))
        outs.append(jnp.dot(p, v, preferred_element_type=jnp.float32))
    o_ref[...] = jnp.concatenate(outs, axis=-1).astype(o_ref.dtype)


def mha_attention(qkv, mask, *, num_heads):
    """qkv: (B, S, 3*D) fused [q|k|v]; mask: (B, 1, S) with 0 = masked key.
    Returns (B, S, D) already in "heads re-merged" layout."""
    bsz, s, d3 = qkv.shape
    d = d3 // 3
    dk = d // num_heads
    itemsize = jnp.dtype(qkv.dtype).itemsize
    cost = pl.CostEstimate(
        flops=4 * bsz * num_heads * s * s * dk,
        transcendentals=bsz * num_heads * s * s,
        bytes_accessed=(bsz * s * d3 + bsz * s * d) * itemsize + mask.size * 4,
    )
    return pl.pallas_call(
        functools.partial(_attention_kernel, num_heads=num_heads, head_dim=dk),
        out_shape=jax.ShapeDtypeStruct((bsz, s, d), qkv.dtype),
        grid_spec=pltpu.PrefetchScalarGridSpec(
            num_scalar_prefetch=0,
            grid=(bsz,),
            in_specs=[
                pl.BlockSpec((None, 1, s), lambda b: (b, 0, 0)),
                pl.BlockSpec((None, s, d3), lambda b: (b, 0, 0)),
            ],
            out_specs=pl.BlockSpec((None, s, d), lambda b: (b, 0, 0)),
        ),
        compiler_params=pltpu.CompilerParams(
            dimension_semantics=("parallel",),
            vmem_limit_bytes=_VMEM_LIMIT_BYTES,
        ),
        cost_estimate=cost,
    )(mask, qkv)


# --------------------------------------------------------------------------
# EncoderLayer forward (wrapper gluing the kernels together)
# --------------------------------------------------------------------------
def encoder_layer_forward(x, mask, params, *, eps=1e-6):
    """x: (B, S, D); mask: (B, 1, S) with 0 = masked key position."""
    bsz, s, d = x.shape
    h = params["num_heads"]
    dk = d // h
    m = bsz * s
    x2 = x.reshape(m, d)

    # Fold 1/sqrt(dk) into the Q columns of the fused QKV projection
    # (one tiny elementwise op on the weights; removes a per-tile VPU pass).
    scale = 1.0 / math.sqrt(dk)
    col_scale = jnp.concatenate([
        jnp.full((d,), scale, dtype=params["w_qkv"].dtype),
        jnp.ones((2 * d,), dtype=params["w_qkv"].dtype),
    ])
    w_qkv = params["w_qkv"] * col_scale[None, :]
    b_qkv = params["b_qkv"] * col_scale

    # ---- sublayer 0: x + self_attn(LayerNorm(x)) ----
    # LayerNorm fused as a prologue of the QKV projection (no xn round trip).
    qkv = linear_forward(x2, w_qkv, b_qkv,
                         ln=(params["ln1_a"], params["ln1_b"], eps))   # (M, 3D)
    attn = mha_attention(qkv.reshape(bsz, s, 3 * d), mask, num_heads=h)  # (B,S,D)
    # TODO(synk): nn.Dropout is treated as identity (inference / eval mode).
    x2 = linear_forward(attn.reshape(m, d), params["w_o"], params["b_o"],
                        residual=x2)

    # ---- sublayer 1: x + feed_forward(LayerNorm(x)) ----
    # LayerNorm fused as a prologue of the first FFN matmul (+ fused ReLU).
    hid = linear_forward(x2, params["w_1"], params["b_1"],
                         ln=(params["ln2_a"], params["ln2_b"], eps),
                         activation="relu")
    x2 = linear_forward(hid, params["w_2"], params["b_2"], residual=x2)
    return x2.reshape(bsz, s, d)


def init_encoder_layer_params(key, d_model, num_heads, d_ff, dtype=jnp.float32):
    keys = jax.random.split(key, 12)

    def linear_init(kw, kb, fan_in, fan_out):
        bound = 1.0 / math.sqrt(fan_in)
        w = jax.random.uniform(kw, (fan_in, fan_out), dtype, -bound, bound)
        b = jax.random.uniform(kb, (fan_out,), dtype, -bound, bound)
        return w, b

    wq, bq = linear_init(keys[0], keys[1], d_model, d_model)
    wk, bk = linear_init(keys[2], keys[3], d_model, d_model)
    wv, bv = linear_init(keys[4], keys[5], d_model, d_model)
    wo, bo = linear_init(keys[6], keys[7], d_model, d_model)
    w1, b1 = linear_init(keys[8], keys[9], d_model, d_ff)
    w2, b2 = linear_init(keys[10], keys[11], d_ff, d_model)
    return {
        "num_heads": num_heads,
        "ln1_a": jnp.ones((d_model,), dtype), "ln1_b": jnp.zeros((d_model,), dtype),
        "ln2_a": jnp.ones((d_model,), dtype), "ln2_b": jnp.zeros((d_model,), dtype),
        # Weights stored (in, out) so kernels compute x @ W directly.
        "w_qkv": jnp.concatenate([wq, wk, wv], axis=1),     # fused QKV projection
        "b_qkv": jnp.concatenate([bq, bk, bv], axis=0),
        "w_o": wo, "b_o": bo,
        "w_1": w1, "b_1": b1,
        "w_2": w2, "b_2": b2,
    }


# --------------------------------------------------------------------------
# Pure-JAX reference (mirrors the PyTorch EncoderLayer math)
# --------------------------------------------------------------------------
def _reference_encoder_layer(x, mask, params, eps=1e-6):
    def ln(t, g, b):
        mean = t.mean(-1, keepdims=True)
        var = jnp.sum((t - mean) ** 2, axis=-1, keepdims=True) / (t.shape[-1] - 1)
        std = jnp.sqrt(var)
        return g * (t - mean) / (std + eps) + b

    bsz, s, d = x.shape
    h = params["num_heads"]
    dk = d // h

    xn = ln(x, params["ln1_a"], params["ln1_b"])
    qkv = xn @ params["w_qkv"] + params["b_qkv"]
    q, k, v = jnp.split(qkv, 3, axis=-1)

    def heads(t):
        return t.reshape(bsz, s, h, dk).transpose(0, 2, 1, 3)

    q, k, v = heads(q), heads(k), heads(v)
    scores = jnp.einsum("bhqd,bhkd->bhqk", q, k) / math.sqrt(dk)
    scores = jnp.where(mask[:, None, :, :] == 0, -1e9, scores)
    p = jax.nn.softmax(scores, axis=-1)
    attn = jnp.einsum("bhqk,bhkd->bhqd", p, v)
    attn = attn.transpose(0, 2, 1, 3).reshape(bsz, s, d)
    x1 = x + (attn @ params["w_o"] + params["b_o"])

    xn2 = ln(x1, params["ln2_a"], params["ln2_b"])
    hid = jnp.maximum(xn2 @ params["w_1"] + params["b_1"], 0.0)
    return x1 + (hid @ params["w_2"] + params["b_2"])


if __name__ == "__main__":
    key = jax.random.PRNGKey(0)
    k_x, k_p = jax.random.split(key)

    batch, seq, d_model, num_heads, d_ff = 2, 8, 32, 4, 128
    x = jax.random.normal(k_x, (batch, seq, d_model), dtype=jnp.float32)
    mask = jnp.ones((batch, 1, seq), dtype=jnp.int32)
    mask = mask.at[1, 0, 6:].set(0)     # mask the last two key positions of batch 1

    params = init_encoder_layer_params(k_p, d_model, num_heads, d_ff)

    out = encoder_layer_forward(x, mask, params)
    out = jax.block_until_ready(out)

    with jax.default_matmul_precision("highest"):
        ref = _reference_encoder_layer(x, mask, params)
    ref = jax.block_until_ready(ref)

    assert out.shape == (batch, seq, d_model)
    assert bool(jnp.all(jnp.isfinite(out)))
    assert jnp.allclose(out, ref, atol=1e-3, rtol=1e-3), \
        float(jnp.max(jnp.abs(out - ref)))

    print("KERNEL_OK")
</pallas_src>

<mosaic_0001>
module attributes {stable_mosaic.version = 11 : i64} {
  func.func @kernel(%arg0: i32, %arg1: i32, %arg2: memref<16x32xf32, #tpu.memory_space<vmem>>, %arg3: memref<1x32xf32, #tpu.memory_space<vmem>>, %arg4: memref<1x32xf32, #tpu.memory_space<vmem>>, %arg5: memref<32x96xf32, #tpu.memory_space<vmem>>, %arg6: memref<1x96xf32, #tpu.memory_space<vmem>>, %arg7: memref<16x96xf32, #tpu.memory_space<vmem>>) attributes {dimension_semantics = [#tpu.dimension_semantics<parallel>, #tpu.dimension_semantics<parallel>], iteration_bounds = array<i64: 1, 1>, scalar_prefetch = 0 : i64, scratch_operands = 0 : i64, tpu.core_type = #tpu.core_type<tc>, window_params = [{transform_indices = @transform_0, window_bounds = array<i64: 16, 32>}, {pipeline_mode = #tpu.pipeline_mode<synchronous>, transform_indices = @transform_1, window_bounds = array<i64: 1, 32>}, {pipeline_mode = #tpu.pipeline_mode<synchronous>, transform_indices = @transform_2, window_bounds = array<i64: 1, 32>}, {transform_indices = @transform_3, window_bounds = array<i64: 32, 96>}, {transform_indices = @transform_4, window_bounds = array<i64: 1, 96>}, {transform_indices = @transform_5, window_bounds = array<i64: 16, 96>}]} {
    %c0 = arith.constant 0 : index
    %c0_0 = arith.constant 0 : index
    %0 = vector.load %arg2[%c0, %c0_0] : memref<16x32xf32, #tpu.memory_space<vmem>>, vector<16x32xf32>
    %cst = arith.constant dense<0.000000e+00> : vector<16xf32>
    %1 = vector.multi_reduction <add>, %0, %cst [1] : vector<16x32xf32> to vector<16xf32>
    %2 = vector.shape_cast %1 : vector<16xf32> to vector<16x1xf32>
    %cst_1 = arith.constant 3.200000e+01 : f32
    %3 = vector.broadcast %cst_1 : f32 to vector<16x1xf32>
    %4 = arith.divf %2, %3 : vector<16x1xf32>
    %5 = vector.broadcast %4 : vector<16x1xf32> to vector<16x32xf32>
    %6 = arith.subf %0, %5 : vector<16x32xf32>
    %7 = arith.mulf %6, %6 : vector<16x32xf32>
    %cst_2 = arith.constant dense<0.000000e+00> : vector<16xf32>
    %8 = vector.multi_reduction <add>, %7, %cst_2 [1] : vector<16x32xf32> to vector<16xf32>
    %9 = vector.shape_cast %8 : vector<16xf32> to vector<16x1xf32>
    %cst_3 = arith.constant 0.0322580636 : f32
    %10 = vector.broadcast %cst_3 : f32 to vector<16x1xf32>
    %11 = arith.mulf %9, %10 : vector<16x1xf32>
    %12 = math.sqrt %11 : vector<16x1xf32>
    %c0_4 = arith.constant 0 : index
    %c0_5 = arith.constant 0 : index
    %13 = vector.load %arg3[%c0_4, %c0_5] : memref<1x32xf32, #tpu.memory_space<vmem>>, vector<1x32xf32>
    %14 = vector.broadcast %13 : vector<1x32xf32> to vector<16x32xf32>
    %15 = arith.mulf %14, %6 : vector<16x32xf32>
    %cst_6 = arith.constant 9.99999997E-7 : f32
    %16 = vector.broadcast %cst_6 : f32 to vector<16x1xf32>
    %17 = arith.addf %12, %16 : vector<16x1xf32>
    %18 = vector.broadcast %17 : vector<16x1xf32> to vector<16x32xf32>
    %19 = arith.divf %15, %18 : vector<16x32xf32>
    %c0_7 = arith.constant 0 : index
    %c0_8 = arith.constant 0 : index
    %20 = vector.load %arg4[%c0_7, %c0_8] : memref<1x32xf32, #tpu.memory_space<vmem>>, vector<1x32xf32>
    %21 = vector.broadcast %20 : vector<1x32xf32> to vector<16x32xf32>
    %22 = arith.addf %19, %21 : vector<16x32xf32>
    %c0_9 = arith.constant 0 : index
    %c0_10 = arith.constant 0 : index
    %23 = vector.load %arg5[%c0_9, %c0_10] : memref<32x96xf32, #tpu.memory_space<vmem>>, vector<32x96xf32>
    %cst_11 = arith.constant dense<0.000000e+00> : vector<16x96xf32>
    %24 = tpu.matmul %22, %23, %cst_11 {dimension_numbers = #tpu.dot_dimension_numbers<[1], [0], [0], [1], [0, 0, 1, 1], [], []>} : vector<16x32xf32>, vector<32x96xf32>, vector<16x96xf32> -> vector<16x96xf32>
    %c0_12 = arith.constant 0 : index
    %c0_13 = arith.constant 0 : index
    %25 = vector.load %arg6[%c0_12, %c0_13] : memref<1x96xf32, #tpu.memory_space<vmem>>, vector<1x96xf32>
    %26 = vector.broadcast %25 : vector<1x96xf32> to vector<16x96xf32>
    %27 = arith.addf %24, %26 : vector<16x96xf32>
    %c0_14 = arith.constant 0 : index
    %c0_15 = arith.constant 0 : index
    %28 = vector.load %arg7[%c0_14, %c0_15] : memref<16x96xf32, #tpu.memory_space<vmem>>, vector<16x96xf32>
    tpu.vector_store %arg7[%c0_14, %c0_15], %27 {strides = array<i32>} : memref<16x96xf32, #tpu.memory_space<vmem>>, vector<16x96xf32>,
    return
  }
  func.func @transform_0(%arg0: i32, %arg1: i32) -> (i32, i32) {
    %c0_i32 = arith.constant 0 : i32
    %c0_i32_0 = arith.constant 0 : i32
    return %arg0, %c0_i32 : i32, i32
  }
  func.func @transform_1(%arg0: i32, %arg1: i32) -> (i32, i32) {
    %c0_i32 = arith.constant 0 : i32
    %c0_i32_0 = arith.constant 0 : i32
    %c0_i32_1 = arith.constant 0 : i32
    return %c0_i32, %c0_i32_0 : i32, i32
  }
  func.func @transform_2(%arg0: i32, %arg1: i32) -> (i32, i32) {
    %c0_i32 = arith.constant 0 : i32
    %c0_i32_0 = arith.constant 0 : i32
    %c0_i32_1 = arith.constant 0 : i32
    return %c0_i32, %c0_i32_0 : i32, i32
  }
  func.func @transform_3(%arg0: i32, %arg1: i32) -> (i32, i32) {
    %c0_i32 = arith.constant 0 : i32
    %c0_i32_0 = arith.constant 0 : i32
    return %c0_i32, %arg1 : i32, i32
  }
  func.func @transform_4(%arg0: i32, %arg1: i32) -> (i32, i32) {
    %c0_i32 = arith.constant 0 : i32
    %c0_i32_0 = arith.constant 0 : i32
    return %c0_i32, %arg1 : i32, i32
  }
  func.func @transform_5(%arg0: i32, %arg1: i32) -> (i32, i32) {
    %c0_i32 = arith.constant 0 : i32
    return %arg0, %arg1 : i32, i32
  }
}

</mosaic_0001>

<llo_original>
// kernel: tpu_custom_call.1
$region0: #{tpu_custom_call.1}
  #allocation0 [shape = 'u32[]', space=smem, size = 0x4, offset = 0x4, fixed_abs, tag = 'smem constant byte address 0x4 - core index']
  #allocation1 [shape = 'u32[144,128]{1,0:T(1,128)}', space=vmem, size = 0x12000, scoped, tag = 'internal scratch']
  %s0 = inlined_call_operand.hbm [shape: f32[16,32], index: 0, kind: input, shape index: {}]
  %s1 = inlined_call_operand.hbm [shape: f32[1,32], index: 1, kind: input, shape index: {}]
  %s2 = inlined_call_operand.hbm [shape: f32[1,32], index: 2, kind: input, shape index: {}]
  %s3 = inlined_call_operand.hbm [shape: f32[32,96], index: 3, kind: input, shape index: {}]
  %s4 = inlined_call_operand.hbm [shape: f32[1,96], index: 4, kind: input, shape index: {}]
  %s5 = inlined_call_operand.hbm [shape: f32[16,96], index: 5, kind: output, shape index: {}]
  %s6 = sld [smem:[#allocation0]]
  $region50: #{tpu_custom_call.1} parent=0
    _
  %s8 = ssub.s32 1, %s6
  %s9 = scalar_select 0, %s8, %s6
  $region1: #{tpu_custom_call.1} parent=0
    #allocation2 [shape = 'u8[8192]{0}', space=vmem, size = 0x2000, scoped, tag = 'input window, operand 0, single buffered']
    #allocation3 [shape = 's32[1]{0}', space=sflag, size = 0x4, scoped, tag = 'scoped memory for tpu_custom_call.1']
    #allocation4 [shape = 's32[1]{0}', space=sflag, size = 0x4, scoped, tag = 'scoped memory for tpu_custom_call.1']
    #allocation5 [shape = 'u8[512]{0}', space=vmem, size = 0x400, scoped, tag = 'input window, operand 1, single buffered']
    #allocation6 [shape = 's32[1]{0}', space=sflag, size = 0x4, scoped, tag = 'scoped memory for tpu_custom_call.1']
    #allocation7 [shape = 'u8[512]{0}', space=vmem, size = 0x400, scoped, tag = 'input window, operand 2, single buffered']
    #allocation8 [shape = 'u8[16384]{0}', space=vmem, size = 0x4000, scoped, tag = 'input window, operand 3, single buffered']
    #allocation9 [shape = 's32[1]{0}', space=sflag, size = 0x4, scoped, tag = 'scoped memory for tpu_custom_call.1']
    #allocation10 [shape = 'u8[512]{0}', space=vmem, size = 0x400, scoped, tag = 'input window, operand 4, single buffered']
    #allocation11 [shape = 'u8[8192]{0}', space=vmem, size = 0x2000, scoped, tag = 'output window, operand 0, single buffered']
    %10 = vsyncpa [#allocation3], 0
    %11 = vsyncpa [#allocation6], 0
    %12 = vsyncpa [#allocation9], 0
    %13 = vsyncpa [#allocation4], 0
    // Predicated region
    $region2: #{tpu_custom_call.1} parent=1 // pred_check
      _
    $region3: #{tpu_custom_call.1} parent=1 // pred_check_branch
      %15 = sbr.rel (0) target = $region5
    $region4: #{tpu_custom_call.1} parent=1 // pred_region
      %s17 = ssub.s32 256, 256
      %18 = vsyncadd [#allocation3], %s17
      %s19 = sshll.u32 [#allocation2], 4
      %s20 = int_to_ptr.vmem [resolvable:$true] %s19
      %25 = dma.hbm_to_vmem [thread:$0]  %s0, 256, %s20, [#allocation3], 128, 128, 8
    $region5: #{tpu_custom_call.1} parent=1 // pred_fallthru
      _
    // Predicated region
    $region6: #{tpu_custom_call.1} parent=1 // pred_check
      _
    $region7: #{tpu_custom_call.1} parent=1 // pred_check_branch
      %27 = sbr.rel (0) target = $region9
    $region8: #{tpu_custom_call.1} parent=1 // pred_region
      %s29 = ssub.s32 16, 16
      %30 = vsyncadd [#allocation6], %s29
      %s32 = sshll.u32 [#allocation5], 4
      %s33 = int_to_ptr.vmem [resolvable:$true] %s32
      %35 = dma.hbm_to_vmem [thread:$0]  %s1, 16, %s33, [#allocation6]
    $region9: #{tpu_custom_call.1} parent=1 // pred_fallthru
      _
    // Predicated region
    $region10: #{tpu_custom_call.1} parent=1 // pred_check
      _
    $region11: #{tpu_custom_call.1} parent=1 // pred_check_branch
      %37 = sbr.rel (0) target = $region13
    $region12: #{tpu_custom_call.1} parent=1 // pred_region
      %s39 = ssub.s32 16, 16
      %40 = vsyncadd [#allocation6], %s39
      %s42 = sshll.u32 [#allocation7], 4
      %s43 = int_to_ptr.vmem [resolvable:$true] %s42
      %45 = dma.hbm_to_vmem [thread:$0]  %s2, 16, %s43, [#allocation6]
    $region13: #{tpu_custom_call.1} parent=1 // pred_fallthru
      _
    // Predicated region
    $region14: #{tpu_custom_call.1} parent=1 // pred_check
      _
    $region15: #{tpu_custom_call.1} parent=1 // pred_check_branch
      %47 = sbr.rel (0) target = $region17
    $region16: #{tpu_custom_call.1} parent=1 // pred_region
      %s49 = ssub.s32 512, 512
      %50 = vsyncadd [#allocation9], %s49
      %s51 = sshll.u32 [#allocation8], 4
      %s52 = int_to_ptr.vmem [resolvable:$true] %s51
      %57 = dma.hbm_to_vmem [thread:$0]  %s3, 512, %s52, [#allocation9], 128, 128, 8
    $region17: #{tpu_custom_call.1} parent=1 // pred_fallthru
      _
    // Predicated region
    $region18: #{tpu_custom_call.1} parent=1 // pred_check
      _
    $region19: #{tpu_custom_call.1} parent=1 // pred_check_branch
      %59 = sbr.rel (0) target = $region21
    $region20: #{tpu_custom_call.1} parent=1 // pred_region
      %s61 = ssub.s32 16, 16
      %62 = vsyncadd [#allocation9], %s61
      %s64 = sshll.u32 [#allocation10], 4
      %s65 = int_to_ptr.vmem [resolvable:$true] %s64
      %67 = dma.hbm_to_vmem [thread:$0]  %s4, 16, %s65, [#allocation9]
    $region21: #{tpu_custom_call.1} parent=1 // pred_fallthru
      _
    // Predicated region
    $region22: #{tpu_custom_call.1} parent=1 // pred_check
      _
    $region23: #{tpu_custom_call.1} parent=1 // pred_check_branch
      %69 = sbr.rel (0) target = $region25
    $region24: #{tpu_custom_call.1} parent=1 // pred_region
      %70 = dma.done [#allocation3], 256
    $region25: #{tpu_custom_call.1} parent=1 // pred_fallthru
      _
    // Predicated region
    $region26: #{tpu_custom_call.1} parent=1 // pred_check
      _
    $region27: #{tpu_custom_call.1} parent=1 // pred_check_branch
      %72 = sbr.rel (0) target = $region29
    $region28: #{tpu_custom_call.1} parent=1 // pred_region
      %73 = dma.done [#allocation6], 16
    $region29: #{tpu_custom_call.1} parent=1 // pred_fallthru
      _
    // Predicated region
    $region30: #{tpu_custom_call.1} parent=1 // pred_check
      _
    $region31: #{tpu_custom_call.1} parent=1 // pred_check_branch
      %75 = sbr.rel (0) target = $region33
    $region32: #{tpu_custom_call.1} parent=1 // pred_region
      %76 = dma.done [#allocation6], 16
    $region33: #{tpu_custom_call.1} parent=1 // pred_fallthru
      _
    // Predicated region
    $region34: #{tpu_custom_call.1} parent=1 // pred_check
      _
    $region35: #{tpu_custom_call.1} parent=1 // pred_check_branch
      %78 = sbr.rel (0) target = $region37
    $region36: #{tpu_custom_call.1} parent=1 // pred_region
      %79 = dma.done [#allocation9], 512
    $region37: #{tpu_custom_call.1} parent=1 // pred_fallthru
      _
    // Predicated region
    $region38: #{tpu_custom_call.1} parent=1 // pred_check
      _
    $region39: #{tpu_custom_call.1} parent=1 // pred_check_branch
      %81 = sbr.rel (0) target = $region41
    $region40: #{tpu_custom_call.1} parent=1 // pred_region
      %82 = dma.done [#allocation9], 16
    $region41: #{tpu_custom_call.1} parent=1 // pred_fallthru
      _
    %v83 = vld [vmem:[#allocation2] sm:$0xff]
    %v84 = vld [vmem:[#allocation2 + $0x8] sm:$0xff]
    %vm85 = vcmask 261120
    %v86 = vsel %vm85, %v83, 0.0
    %87 = vadd.xlane.f32.xlu0 %v86
    %v88 = vpop.xlane.xlu0 %87
    %v89 = vsel %vm85, %v84, 0.0
    %90 = vadd.xlane.f32.xlu0 %v89
    %v91 = vpop.xlane.xlu0 %90
    %v92 = vrcp.pop 32.0
    %v93 = vmul.f32 %v88, %v92
    %v94 = vmul.f32 %v91, %v92
    %v95 = vsub.f32 %v83, %v93
    %v96 = vsub.f32 %v84, %v94
    %v97 = vmul.f32 %v95, %v95
    %v98 = vmul.f32 %v96, %v96
    %v99 = vsel %vm85, %v97, 0.0
    %100 = vadd.xlane.f32.xlu0 %v99
    %v101 = vpop.xlane.xlu0 %100
    %v102 = vsel %vm85, %v98, 0.0
    %103 = vadd.xlane.f32.xlu0 %v102
    %v104 = vpop.xlane.xlu0 %103
    %v105 = vmul.f32 %v101, 0.032258064
    %v106 = vmul.f32 %v104, 0.032258064
    %v107 = vrsqrt.pop %v105
    %v108 = vmul.f32 %v105, %v107
    %vm109 = vcmp.eq.f32.partialorder %v105, inf
    %v110 = vsel %vm109, %v105, %v108
    %vm111 = vcmp.eq.f32.partialorder %v105, 0.0
    %v112 = vand.u32 %v105, 2147483648
    %v113 = vsel %vm111, %v112, %v110
    %v114 = vrsqrt.pop %v106
    %v115 = vmul.f32 %v106, %v114
    %vm116 = vcmp.eq.f32.partialorder %v106, inf
    %v117 = vsel %vm116, %v106, %v115
    %vm118 = vcmp.eq.f32.partialorder %v106, 0.0
    %v119 = vand.u32 %v106, 2147483648
    %v120 = vsel %vm118, %v119, %v117
    %v121 = vld [vmem:[#allocation5] sm:$0x1]
    %v123 = vlaneseq
    %v124 = vshrl.u32 %v123, 7
    %v125 = vsub.s32 0, %v124
    %v126 = vrot.slane %v121, %v125
    %v128 = vmul.f32 %v126, %v95
    %v129 = vmul.f32 %v126, %v96
    %v130 = vadd.f32 %v113, 1e-06
    %v131 = vadd.f32 %v120, 1e-06
    %v132 = vrcp.pop %v130
    %v133 = vmul.f32 %v128, %v132
    %v134 = vrcp.pop %v131
    %v135 = vmul.f32 %v129, %v134
    %v136 = vld [vmem:[#allocation7] sm:$0x1]
    %v138 = vlaneseq
    %v139 = vshrl.u32 %v138, 7
    %v140 = vsub.s32 0, %v139
    %v141 = vrot.slane %v136, %v140
    %v143 = vadd.f32 %v133, %v141
    %v144 = vadd.f32 %v135, %v141
    %v145 = vld [vmem:[#allocation8] sm:$0xff]
    %v146 = vld [vmem:[#allocation8 + $0x8] sm:$0xff]
    %v147 = vld [vmem:[#allocation8 + $0x10] sm:$0xff]
    %v148 = vld [vmem:[#allocation8 + $0x18] sm:$0xff]
    %v149 = vld [vmem:[#allocation10] sm:$0x1]
    %v151 = vlaneseq
    %v152 = vshrl.u32 %v151, 7
    %v153 = vsub.s32 0, %v152
    %v154 = vrot.slane %v149, %v153
    %v157 = vsel %vm85, %v143, 0
    %v160 = vsel %vm85, %v144, 0
    %162 = vmatprep.subr.mxu0 0.0
    %163 = vmatpush1.msra.mxu0 %v145
    %164 = vmatprep.subr.mxu0 0.0
    %165 = vmatpush1.msra.mxu0 %v146
    %166 = vmatprep.subr.mxu0 0.0
    %167 = vmatpush1.msra.mxu0 %v147
    %168 = vmatprep.subr.mxu0 0.0
    %169 = vmatpush1.msra.mxu0 %v148
    %170 = vmatprep.subr.mxu0 0.0
    %171 = vmatpush1.msra.mxu0 0.0
    %172 = vmatprep.subr.mxu0 0.0
    %173 = vmatpush1.msra.mxu0 0.0
    %174 = vmatprep.subr.mxu0 0.0
    %175 = vmatpush1.msra.mxu0 0.0
    %176 = vmatprep.subr.mxu0 0.0
    %177 = vmatpush1.msra.mxu0 0.0
    %178 = vmatprep.subr.mxu0 0.0
    %179 = vmatpush1.msra.mxu0 0.0
    %180 = vmatprep.subr.mxu0 0.0
    %181 = vmatpush1.msra.mxu0 0.0
    %182 = vmatprep.subr.mxu0 0.0
    %183 = vmatpush1.msra.mxu0 0.0
    %184 = vmatprep.subr.mxu0 0.0
    %185 = vmatpush1.msra.mxu0 0.0
    %186 = vmatprep.subr.mxu0 0.0
    %187 = vmatpush1.msra.mxu0 0.0
    %188 = vmatprep.subr.mxu0 0.0
    %189 = vmatpush1.msra.mxu0 0.0
    %190 = vmatprep.subr.mxu0 0.0
    %191 = vmatpush1.msra.mxu0 0.0
    %192 = vmatprep.subr.mxu0 0.0
    %193 = vmatpush1.msra.mxu0 0.0
    %194 = vmatprep.subr.mxu0 0.0
    %195 = vmatpush1.msra.mxu0 0.0
    %196 = vmatprep.subr.mxu0 0.0
    %197 = vmatpush1.msra.mxu0 0.0
    %198 = vmatprep.subr.mxu0 0.0
    %199 = vmatpush1.msra.mxu0 0.0
    %200 = vmatprep.subr.mxu0 0.0
    %201 = vmatpush1.msra.mxu0 0.0
    %202 = vmatprep.subr.mxu0 0.0
    %203 = vmatpush1.msra.mxu0 0.0
    %204 = vmatprep.subr.mxu0 0.0
    %205 = vmatpush1.msra.mxu0 0.0
    %206 = vmatprep.subr.mxu0 0.0
    %207 = vmatpush1.msra.mxu0 0.0
    %208 = vmatprep.subr.mxu0 0.0
    %209 = vmatpush1.msra.mxu0 0.0
    %210 = vmatprep.subr.mxu0 0.0
    %211 = vmatpush1.msra.mxu0 0.0
    %212 = vmatprep.subr.mxu0 0.0
    %213 = vmatpush1.msra.mxu0 0.0
    %214 = vmatprep.subr.mxu0 0.0
    %215 = vmatpush1.msra.mxu0 0.0
    %216 = vmatprep.subr.mxu0 0.0
    %217 = vmatpush1.msra.mxu0 0.0
    %218 = vmatprep.subr.mxu0 0.0
    %219 = vmatpush1.msra.mxu0 0.0
    %220 = vmatprep.subr.mxu0 0.0
    %221 = vmatpush1.msra.mxu0 0.0
    %222 = vmatprep.subr.mxu0 0.0
    %223 = vmatpush1.msra.mxu0 0.0
    %224 = vmatprep.subr.mxu0 0.0
    %225 = vmatpush1.msra.mxu0 0.0
    %226 = vmatprep.mubr.f32.mxu0 0.0
    %227 = vmatmul.mubr.f32.gmra.mrb[0].mxu0 %v157
    %v228 = vpop.f32.mrb[0].mxu0
    %v229 = vadd.f32 %v154, %v228
    %v230 = vpop.f32.mrb[0].mxu0
    %231 = vmatprep.mubr.f32.mxu0 0.0
    %232 = vmatmul.mubr.f32.gmra.mrb[0].mxu0 %v160
    %v233 = vpop.f32.mrb[0].mxu0
    %v234 = vadd.f32 %v154, %v233
    %v235 = vpop.f32.mrb[0].mxu0
    %236 = vdwg.mxu0
    %vm237 = vcmask 785408
    %238 = vst.msk [vmem:[#allocation11] sm:$0xff] %vm237, %v229
    %239 = vst.msk [vmem:[#allocation11 + $0x8] sm:$0xff] %vm237, %v234
    // Predicated region
    $region42: #{tpu_custom_call.1} parent=1 // pred_check
      _
    $region43: #{tpu_custom_call.1} parent=1 // pred_check_branch
      %241 = sbr.rel (0) target = $region45
    $region44: #{tpu_custom_call.1} parent=1 // pred_region
      %s243 = ssub.s32 256, 256
      %244 = vsyncadd [#allocation4], %s243
      %s245 = sshll.u32 [#allocation11], 4
      %s246 = int_to_ptr.vmem [resolvable:$true] %s245
      %251 = dma.vmem_to_hbm [thread:$0]  %s246, 256, %s5, [#allocation4], 128, 128, 8
    $region45: #{tpu_custom_call.1} parent=1 // pred_fallthru
      _
    // Predicated region
    $region46: #{tpu_custom_call.1} parent=1 // pred_check
      _
    $region47: #{tpu_custom_call.1} parent=1 // pred_check_branch
      %253 = sbr.rel (0) target = $region49
    $region48: #{tpu_custom_call.1} parent=1 // pred_region
      %254 = dma.done [#allocation4], 256
    $region49: #{tpu_custom_call.1} parent=1 // pred_fallthru
      _
    %255 = vsyncpa [#allocation3], 1
    %256 = vsyncpa [#allocation6], 1
    %257 = vsyncpa [#allocation9], 1
    %258 = vsyncpa [#allocation4], 1

</llo_original>
